<compile_context>
chip_gen: v6e
topology: v6e:2x2x1
jax: 0.10.0
libtpu: 0.0.40
codegen_flags: <defaults>
</compile_context>

<pallas_src>
import functools

import jax
import jax.numpy as jnp
from jax import lax
from jax.experimental import pallas as pl
from jax.experimental.pallas import tpu as pltpu


def _round_up(x, m):
    return (x + m - 1) // m * m


def _causal_conv1d_kernel(x_ref, w_ref, o_ref, *scratch, kernel_size, dilation,
                          pad, halo, multi_tile):
    """One (batch row, time tile) grid step.

    x_ref     : (1, C_in_p, t_block)   current time tile of x
    w_ref     : (K, C_out, C_in_p)     per-tap weight slabs (constant block)
    o_ref     : (1, C_out, t_block)    output tile
    scratch   : optional (C_in_p, halo) persistent carry = previous tile's
                right edge, right-aligned in a 128-lane-rounded buffer.
    """
    carry_ref = scratch[0] if scratch else None
    x_tile = x_ref[0]                                   # (C_in_p, t_block)
    t_block = x_tile.shape[-1]

    # Left-extend the tile by `halo` columns: carried halo of the previous
    # time tile (multi-tile) or implicit zeros (single tile / t == 0).
    if pad == 0:
        x_ext = x_tile
    elif multi_tile:
        @pl.when(pl.program_id(1) == 0)
        def _():
            # First time tile of this batch row: the halo is implicit zeros.
            carry_ref[...] = jnp.zeros_like(carry_ref)
        x_ext = jnp.concatenate([carry_ref[...], x_tile], axis=1)
    else:
        x_ext = jnp.concatenate(
            [jnp.zeros((x_tile.shape[0], halo), dtype=x_tile.dtype), x_tile],
            axis=1)
    width = x_ext.shape[-1]

    # K taps -> K accumulated MXU matmuls (no im2col copy).  Tap k needs
    # x_ext columns [halo - pad + k*dilation, ... + t_block); misaligned
    # starts are realised with an XLU roll + an aligned take.
    acc = None
    for k in range(kernel_size):
        start = halo - pad + k * dilation
        if start == 0:
            win = x_ext[:, :t_block]
        elif pad > 0 and start == halo:
            win = x_tile                                 # last tap: the tile itself
        elif start % 128 == 0 and t_block % 128 == 0:
            win = x_ext[:, start:start + t_block]        # lane-aligned slice
        elif width % 128 == 0 and t_block % 128 == 0:
            win = pltpu.roll(x_ext, width - start, axis=1)[:, :t_block]
        else:
            # Small single-tile shapes: a plain (possibly masked) slice is fine.
            win = x_ext[:, start:start + t_block]
        part = jnp.dot(w_ref[k], win, preferred_element_type=jnp.float32)
        acc = part if acc is None else acc + part

    o_ref[0] = acc.astype(o_ref.dtype)

    # This tile's right edge becomes the next tile's left halo (right-aligned
    # in the 128-lane-rounded carry buffer -> aligned store).
    if carry_ref is not None:
        carry_ref[...] = x_tile[:, t_block - halo:]


def causal_conv1d(x, w, *, dilation=1, t_block=None, compute_dtype=None):
    """Pallas equivalent of CausalConv1d(in_c, out_c, K, dilation, bias=False)."""
    B, C_in, T = x.shape
    C_out, C_in_w, K = w.shape
    if C_in != C_in_w:
        raise ValueError("weight / input channel mismatch")
    pad = (K - 1) * dilation

    # Optional reduced-precision streaming (halves HBM traffic; f32 MXU accum).
    if compute_dtype is not None:
        x = x.astype(compute_dtype)
        w = w.astype(compute_dtype)
    out_dtype = x.dtype
    itemsize = jnp.dtype(x.dtype).itemsize

    # Sublane-align the channel axis.  No-op for typical WaveNet channel counts
    # (multiples of 8); only tiny/misaligned configs pay this small copy.
    C_in_p = _round_up(max(C_in, 1), 8)
    if C_in_p != C_in:
        x = jnp.pad(x, ((0, 0), (0, C_in_p - C_in), (0, 0)))
        w = jnp.pad(w, ((0, 0), (0, C_in_p - C_in), (0, 0)))

    # Weight as (K, C_out, C_in_p): per-tap slabs, leading-axis indexed in-kernel.
    w_t = jnp.transpose(w, (2, 0, 1))

    pad_lanes = _round_up(pad, 128) if pad > 0 else 0

    # ---- VMEM-budget-driven, generation-aware time-tile selection ----------
    try:
        vmem_cap = int(pltpu.get_tpu_info().vmem_capacity_bytes)
    except Exception:
        vmem_cap = 64 * 1024 * 1024           # conservative: v7x per-TensorCore
    if vmem_cap <= 0:
        vmem_cap = 64 * 1024 * 1024
    vmem_limit = min(3 * vmem_cap // 4, 96 * 1024 * 1024)  # ~48 MiB v7x, 96 MiB v5e/v6e

    if t_block is None:
        # VMEM bytes per time column: double-buffered x and y tiles plus the K
        # tap windows and the f32 accumulator living inside the kernel body.
        per_col = (2 * C_in_p + 2 * C_out) * itemsize + (K * C_in_p + C_out) * 4
        tb_cap = 4096 if vmem_cap > (64 << 20) else 2048
        t_block = max(128, min(tb_cap, (vmem_limit // 2 // per_col) // 128 * 128))

    if t_block >= T:
        t_block, n_t = T, 1                   # single tile: whole sequence
    else:
        t_block = max(128, (t_block // 128) * 128)   # lane-dense output stores
        # The carried halo spans exactly one previous tile, so the tile must be
        # at least as wide as the lane-rounded halo (handles deep dilations).
        t_block = max(t_block, pad_lanes)
        if t_block >= T:
            t_block, n_t = T, 1
        else:
            n_t = pl.cdiv(T, t_block)         # ragged tail: masked tile reads/writes

    multi_tile = n_t > 1
    halo = pad_lanes if multi_tile else pad

    kernel = functools.partial(
        _causal_conv1d_kernel, kernel_size=K, dilation=dilation,
        pad=pad, halo=halo, multi_tile=multi_tile)

    scratch = []
    if multi_tile and pad > 0:
        scratch.append(pltpu.VMEM((C_in_p, halo), x.dtype))

    # TODO(synk): single-buffer the constant weight (pipeline_mode=pl.Buffered(1))
    # and tile C_out with an extra 'parallel' grid axis for C_out >= 256 to
    # reclaim VMEM for a larger t_block on v7x.
    # TODO(synk): for B < 2 on v7x, add outer 'parallel' time super-tiles (halo
    # re-read per super-tile) so both TensorCores are busy.
    y = pl.pallas_call(
        kernel,
        out_shape=jax.ShapeDtypeStruct((B, C_out, T), out_dtype),
        grid_spec=pltpu.PrefetchScalarGridSpec(
            num_scalar_prefetch=0,
            grid=(B, n_t),
            in_specs=[
                pl.BlockSpec((1, C_in_p, t_block), lambda b, t: (b, 0, t)),
                pl.BlockSpec((K, C_out, C_in_p), lambda b, t: (0, 0, 0)),
            ],
            out_specs=pl.BlockSpec((1, C_out, t_block), lambda b, t: (b, 0, t)),
            scratch_shapes=scratch,
        ),
        compiler_params=pltpu.CompilerParams(
            # INVARIANT: the time axis must remain the LAST, sequential
            # ("arbitrary") grid axis.  The carry scratch is only valid when a
            # batch row's time tiles run back-to-back and the carry is reset at
            # t == 0; marking it "parallel" or reordering the grid would
            # silently corrupt results.  Batch rows are independent.
            dimension_semantics=("parallel", "arbitrary"),
            vmem_limit_bytes=vmem_limit,
        ),
    )(x, w_t)
    return y


def _reference_causal_conv1d(x, w, *, dilation=1):
    """Pure-JAX reference matching PyTorch CausalConv1d.forward semantics."""
    K = w.shape[-1]
    pad = (K - 1) * dilation
    return lax.conv_general_dilated(
        x, w, window_strides=(1,), padding=[(pad, 0)],
        rhs_dilation=(dilation,), dimension_numbers=("NCH", "OIH", "NCH"))


if __name__ == "__main__":
    key = jax.random.PRNGKey(0)

    def _check(name, *, B, C_in, C_out, T, K, dilation, t_block, sub_key):
        kx, kw = jax.random.split(sub_key)
        x = jax.random.normal(kx, (B, C_in, T), dtype=jnp.float32)
        w = jax.random.normal(kw, (C_out, C_in, K), dtype=jnp.float32) * 0.1
        y = jax.block_until_ready(
            causal_conv1d(x, w, dilation=dilation, t_block=t_block))
        y_ref = _reference_causal_conv1d(x, w, dilation=dilation)
        assert y.shape == (B, C_out, T), f"{name}: bad shape {y.shape}"
        assert jnp.allclose(y, y_ref, atol=1e-3, rtol=1e-3), f"{name}: mismatch"

    k1, k2, k3 = jax.random.split(key, 3)

    # Case 1: small single-tile shapes (CausalConv1d(4, 8, 3, dilation=2)).
    _check("single-tile", B=2, C_in=4, C_out=8, T=16, K=3, dilation=2,
           t_block=None, sub_key=k1)

    # Case 2: multi-tile time axis with a ragged tail - exercises the carried
    # halo, the XLU-roll tap windows, and the masked (no pad/trim) last tile.
    _check("multi-tile-ragged", B=2, C_in=8, C_out=16, T=200, K=3, dilation=4,
           t_block=128, sub_key=k2)

    # Case 3: kernel_size=1 (the padding == 0 branch of the module).
    _check("k1-no-pad", B=2, C_in=8, C_out=8, T=40, K=1, dilation=1,
           t_block=None, sub_key=k3)

    print("KERNEL_OK")
</pallas_src>

<mosaic_0001>
module attributes {stable_mosaic.version = 11 : i64} {
  func.func @_causal_conv1d_kernel(%arg0: i32, %arg1: i32, %arg2: memref<1x8x16xf32, #tpu.memory_space<vmem>>, %arg3: memref<3x8x8xf32, #tpu.memory_space<vmem>>, %arg4: memref<1x8x16xf32, #tpu.memory_space<vmem>>) attributes {dimension_semantics = [#tpu.dimension_semantics<parallel>, #tpu.dimension_semantics<arbitrary>], iteration_bounds = array<i64: 2, 1>, scalar_prefetch = 0 : i64, scratch_operands = 0 : i64, tpu.core_type = #tpu.core_type<tc>, window_params = [{transform_indices = @transform_0, window_bounds = array<i64: 1, 8, 16>}, {pipeline_mode = #tpu.pipeline_mode<synchronous>, transform_indices = @transform_1, window_bounds = array<i64: 3, 8, 8>}, {transform_indices = @transform_2, window_bounds = array<i64: 1, 8, 16>}]} {
    %c0 = arith.constant 0 : index
    %c0_0 = arith.constant 0 : index
    %c0_1 = arith.constant 0 : index
    %0 = vector.load %arg2[%c0, %c0_0, %c0_1] : memref<1x8x16xf32, #tpu.memory_space<vmem>>, vector<1x8x16xf32>
    %1 = vector.shape_cast %0 : vector<1x8x16xf32> to vector<8x16xf32>
    %cst = arith.constant 0.000000e+00 : f32
    %2 = vector.broadcast %cst : f32 to vector<8x4xf32>
    %3 = tpu.concatenate %2, %1 in 1 : vector<8x4xf32>, vector<8x16xf32> -> vector<8x20xf32>
    %4 = vector.extract_strided_slice %3 {offsets = [0, 0], sizes = [8, 16], strides = [1, 1]} : vector<8x20xf32> to vector<8x16xf32>
    %c0_2 = arith.constant 0 : index
    %c0_3 = arith.constant 0 : index
    %c0_4 = arith.constant 0 : index
    %5 = vector.load %arg3[%c0_2, %c0_3, %c0_4] : memref<3x8x8xf32, #tpu.memory_space<vmem>>, vector<1x8x8xf32>
    %6 = vector.shape_cast %5 : vector<1x8x8xf32> to vector<8x8xf32>
    %cst_5 = arith.constant dense<0.000000e+00> : vector<8x16xf32>
    %7 = tpu.matmul %6, %4, %cst_5 {dimension_numbers = #tpu.dot_dimension_numbers<[1], [0], [0], [1], [0, 0, 1, 1], [], []>} : vector<8x8xf32>, vector<8x16xf32>, vector<8x16xf32> -> vector<8x16xf32>
    %8 = vector.extract_strided_slice %3 {offsets = [0, 2], sizes = [8, 16], strides = [1, 1]} : vector<8x20xf32> to vector<8x16xf32>
    %c1 = arith.constant 1 : index
    %c0_6 = arith.constant 0 : index
    %c0_7 = arith.constant 0 : index
    %9 = vector.load %arg3[%c1, %c0_6, %c0_7] : memref<3x8x8xf32, #tpu.memory_space<vmem>>, vector<1x8x8xf32>
    %10 = vector.shape_cast %9 : vector<1x8x8xf32> to vector<8x8xf32>
    %cst_8 = arith.constant dense<0.000000e+00> : vector<8x16xf32>
    %11 = tpu.matmul %10, %8, %cst_8 {dimension_numbers = #tpu.dot_dimension_numbers<[1], [0], [0], [1], [0, 0, 1, 1], [], []>} : vector<8x8xf32>, vector<8x16xf32>, vector<8x16xf32> -> vector<8x16xf32>
    %12 = arith.addf %7, %11 : vector<8x16xf32>
    %c2 = arith.constant 2 : index
    %c0_9 = arith.constant 0 : index
    %c0_10 = arith.constant 0 : index
    %13 = vector.load %arg3[%c2, %c0_9, %c0_10] : memref<3x8x8xf32, #tpu.memory_space<vmem>>, vector<1x8x8xf32>
    %14 = vector.shape_cast %13 : vector<1x8x8xf32> to vector<8x8xf32>
    %cst_11 = arith.constant dense<0.000000e+00> : vector<8x16xf32>
    %15 = tpu.matmul %14, %1, %cst_11 {dimension_numbers = #tpu.dot_dimension_numbers<[1], [0], [0], [1], [0, 0, 1, 1], [], []>} : vector<8x8xf32>, vector<8x16xf32>, vector<8x16xf32> -> vector<8x16xf32>
    %16 = arith.addf %12, %15 : vector<8x16xf32>
    %c0_12 = arith.constant 0 : index
    %c0_13 = arith.constant 0 : index
    %c0_14 = arith.constant 0 : index
    %17 = vector.load %arg4[%c0_12, %c0_13, %c0_14] : memref<1x8x16xf32, #tpu.memory_space<vmem>>, vector<1x8x16xf32>
    %18 = vector.shape_cast %17 : vector<1x8x16xf32> to vector<8x16xf32>
    %19 = vector.shape_cast %16 : vector<8x16xf32> to vector<1x8x16xf32>
    tpu.vector_store %arg4[%c0_12, %c0_13, %c0_14], %19 {strides = array<i32>} : memref<1x8x16xf32, #tpu.memory_space<vmem>>, vector<1x8x16xf32>,
    return
  }
  func.func @transform_0(%arg0: i32, %arg1: i32) -> (i32, i32, i32) {
    %c0_i32 = arith.constant 0 : i32
    %c0_i32_0 = arith.constant 0 : i32
    return %arg0, %c0_i32, %arg1 : i32, i32, i32
  }
  func.func @transform_1(%arg0: i32, %arg1: i32) -> (i32, i32, i32) {
    %c0_i32 = arith.constant 0 : i32
    %c0_i32_0 = arith.constant 0 : i32
    %c0_i32_1 = arith.constant 0 : i32
    %c0_i32_2 = arith.constant 0 : i32
    return %c0_i32, %c0_i32_0, %c0_i32_1 : i32, i32, i32
  }
  func.func @transform_2(%arg0: i32, %arg1: i32) -> (i32, i32, i32) {
    %c0_i32 = arith.constant 0 : i32
    %c0_i32_0 = arith.constant 0 : i32
    return %arg0, %c0_i32, %arg1 : i32, i32, i32
  }
}

</mosaic_0001>

<llo_original>
// kernel: tpu_custom_call.1
$region0: #{tpu_custom_call.1}
  #allocation0 [shape = 'u32[]', space=smem, size = 0x4, offset = 0x4, fixed_abs, tag = 'smem constant byte address 0x4 - core index']
  #allocation1 [shape = 'u32[144,128]{1,0:T(1,128)}', space=vmem, size = 0x12000, scoped, tag = 'internal scratch']
  %s0 = inlined_call_operand.hbm [shape: f32[2,8,16], index: 0, kind: input, shape index: {}]
  %s1 = inlined_call_operand.hbm [shape: f32[3,8,8], index: 1, kind: input, shape index: {}]
  %s2 = inlined_call_operand.hbm [shape: f32[2,8,16], index: 2, kind: output, shape index: {}]
  %s3 = sld [smem:[#allocation0]]
  $region49: #{tpu_custom_call.1} parent=0
    _
  %s5 = ssub.s32 1, %s3
  %s6 = scalar_select 0, %s5, %s3
  $region1: #{tpu_custom_call.1} parent=0
    #allocation2 [shape = 'u8[8192]{0}', space=vmem, size = 0x2000, scoped, tag = 'input window, operand 0']
    #allocation3 [shape = 's32[2]{0}', space=sflag, size = 0x8, scoped, tag = 'scoped memory for tpu_custom_call.1']
    #allocation4 [shape = 's32[2]{0}', space=sflag, size = 0x8, scoped, tag = 'scoped memory for tpu_custom_call.1']
    #allocation5 [shape = 'u8[12288]{0}', space=vmem, size = 0x3000, scoped, tag = 'input window, operand 1, single buffered']
    #allocation6 [shape = 's32[1]{0}', space=sflag, size = 0x4, scoped, tag = 'scoped memory for tpu_custom_call.1']
    #allocation7 [shape = 'u8[8192]{0}', space=vmem, size = 0x2000, scoped, tag = 'output window, operand 0']
    %7 = vsyncpa [#allocation3], 0
    %s8 = scalar_lea.sflag [#allocation3], 1
    %9 = vsyncpa %s8, 0
    %10 = vsyncpa [#allocation6], 0
    %11 = vsyncpa [#allocation4], 0
    %s12 = scalar_lea.sflag [#allocation4], 1
    %13 = vsyncpa %s12, 0
    loop: start=0, step=1, limit=4
    $region2: #{tpu_custom_call.1} parent=1 // loop_pre_header
      _
    $region3: #{tpu_custom_call.1} parent=1 // loop_header
      %s15 = sphi 0, %s19
      %p16 = scmp.ge.s32.totalorder %s15, 4
      %s22 = sphi 0, %s34
      %s23 = sphi 0, %s30
      %s24 = sphi 0, %s22
      %s25 = sphi 0, %s23
      %s26 = sphi 0, %s24
      %s27 = sphi 0, %s25
      %s39 = sphi 0, %s41
      %s42 = sphi 0, %s39
      %s43 = sphi 0, %s42
      %s59 = sphi 0, %s43
      %s63 = sphi 0, %s63
      %s65 = sphi 0, %s63
      %s66 = sphi 0, %s65
      %s80 = sphi 0, %s66
      %s88 = sphi 0, %s90
      %s91 = sphi 0, %s88
      %s92 = sphi 0, %s91
      %s108 = sphi 0, %s92
    $region4: #{tpu_custom_call.1} parent=1 // loop_header_branch
      %18 = sbr.rel (%p16) target = $region8
    $region5: #{tpu_custom_call.1} parent=1 // loop_body
      %s20 = ssub.s32 %s15, 1
      %s21 = ssub.s32 %s15, 2
      %s28 = sadd.s32 1, %s23
      %p29 = scmp.ge.s32.totalorder %s28, 1
      %s30 = scalar_select %p29, 0, %s28
      %s31 = sadd.s32 1, %s22
      %s32 = scalar_select %p29, %s31, %s22
      %p33 = scmp.ge.s32.totalorder %s32, 2
      %s34 = scalar_select %p33, 0, %s32
      %s35 = ssub.s32 %s22, %s34
      %s36 = ssub.s32 %s23, %s30
      %s37 = sor.u32 %s35, %s36
      %p38 = scmp.eq.s32.totalorder %s37, 0
      %s40 = sadd.s32 %s39, 1
      %s41 = scalar_select %p38, %s39, %s40
      %p44 = pneg %p38
      %p45 = scmp.eq.s32.totalorder %s15, 1
      %p46 = por %p44, %p45
      %p47 = scmp.ne.s32.totalorder %s39, %s42
      %p48 = scmp.eq.s32.totalorder %s15, 0
      %p49 = por %p47, %p48
      %p50 = scmp.ne.s32.totalorder %s39, %s42
      %p51 = scmp.eq.s32.totalorder %s20, 1
      %p52 = por %p50, %p51
      %p53 = scmp.ne.s32.totalorder %s42, %s43
      %p54 = scmp.eq.s32.totalorder %s20, 0
      %p55 = por %p53, %p54
      %p56 = scmp.ne.s32.totalorder %s42, %s43
      %p57 = scmp.eq.s32.totalorder %s21, 1
      %p58 = por %p56, %p57
      %p60 = scmp.ne.s32.totalorder %s43, %s59
      %p61 = scmp.eq.s32.totalorder %s21, 0
      %p62 = por %p60, %p61
      %s64 = sadd.s32 %s63, 1
      %p67 = scmp.eq.s32.totalorder %s15, 1
      %p68 = scmp.ne.s32.totalorder %s63, %s65
      %p69 = scmp.eq.s32.totalorder %s15, 0
      %p70 = por %p68, %p69
      %p71 = scmp.ne.s32.totalorder %s63, %s65
      %p72 = scmp.eq.s32.totalorder %s20, 1
      %p73 = por %p71, %p72
      %p74 = scmp.ne.s32.totalorder %s65, %s66
      %p75 = scmp.eq.s32.totalorder %s20, 0
      %p76 = por %p74, %p75
      %p77 = scmp.ne.s32.totalorder %s65, %s66
      %p78 = scmp.eq.s32.totalorder %s21, 1
      %p79 = por %p77, %p78
      %p81 = scmp.ne.s32.totalorder %s66, %s80
      %p82 = scmp.eq.s32.totalorder %s21, 0
      %p83 = por %p81, %p82
      %s84 = ssub.s32 %s22, %s34
      %s85 = ssub.s32 %s23, %s30
      %s86 = sor.u32 %s84, %s85
      %p87 = scmp.eq.s32.totalorder %s86, 0
      %s89 = sadd.s32 %s88, 1
      %s90 = scalar_select %p87, %s88, %s89
      %p93 = pneg %p87
      %p94 = scmp.eq.s32.totalorder %s15, 1
      %p95 = por %p93, %p94
      %p96 = scmp.ne.s32.totalorder %s88, %s91
      %p97 = scmp.eq.s32.totalorder %s15, 0
      %p98 = por %p96, %p97
      %p99 = scmp.ne.s32.totalorder %s88, %s91
      %p100 = scmp.eq.s32.totalorder %s20, 1
      %p101 = por %p99, %p100
      %p102 = scmp.ne.s32.totalorder %s91, %s92
      %p103 = scmp.eq.s32.totalorder %s20, 0
      %p104 = por %p102, %p103
      %p105 = scmp.ne.s32.totalorder %s91, %s92
      %p106 = scmp.eq.s32.totalorder %s21, 1
      %p107 = por %p105, %p106
      %p109 = scmp.ne.s32.totalorder %s92, %s108
      %p110 = scmp.eq.s32.totalorder %s21, 0
      %p111 = por %p109, %p110
      %p112 = scmp.le.s32.totalorder 1, %s15
      %p113 = scmp.lt.s32.totalorder %s15, 3
      %p114 = pnand %p112, %p113
      %p115 = pneg %p114
      // Predicated region
      $region9: #{tpu_custom_call.1} parent=5 // pred_check
        _
      $region10: #{tpu_custom_call.1} parent=5 // pred_check_branch
        %117 = sbr.rel (%p114) target = $region12
      $region11: #{tpu_custom_call.1} parent=5 // pred_region
        %s118 = ssub.s32 %s15, 1
        // Predicated region
        $region13: #{tpu_custom_call.1} parent=11 // pred_check
          %p119 = pneg %p76
        $region14: #{tpu_custom_call.1} parent=11 // pred_check_branch
          %121 = sbr.rel (%p119) target = $region16
        $region15: #{tpu_custom_call.1} parent=11 // pred_region
          %s123 = ssub.s32 384, 384
          %124 = vsyncadd [#allocation6], %s123
          %s125 = sshll.u32 [#allocation5], 4
          %s126 = int_to_ptr.vmem [resolvable:$true] %s125
          %131 = dma.hbm_to_vmem [thread:$0]  %s1, 384, %s126, [#allocation6], 128, 128, 8
        $region16: #{tpu_custom_call.1} parent=11 // pred_fallthru
          _
      $region12: #{tpu_custom_call.1} parent=5 // pred_fallthru
        _
      %p132 = scmp.lt.s32.totalorder %s15, 2
      // Predicated region
      $region17: #{tpu_custom_call.1} parent=5 // pred_check
        %p133 = pneg %p132
      $region18: #{tpu_custom_call.1} parent=5 // pred_check_branch
        %135 = sbr.rel (%p133) target = $region20
      $region19: #{tpu_custom_call.1} parent=5 // pred_region
        // Predicated region
        $region21: #{tpu_custom_call.1} parent=19 // pred_check
          %p136 = pneg %p49
        $region22: #{tpu_custom_call.1} parent=19 // pred_check_branch
          %138 = sbr.rel (%p136) target = $region24
        $region23: #{tpu_custom_call.1} parent=19 // pred_region
          %s139 = sand.u32 %s39, 1
          %s140 = scalar_lea.sflag [#allocation3], %s139
          %s141 = sand.u32 %s39, 1
          %s142 = smul.addr %s141, 8
          %s143 = scalar_lea.vmem [#allocation2], %s142
          %s145 = ssub.s32 128, 128
          %146 = vsyncadd %s140, %s145
          %s147 = sadd.s32 %s23, %s22
          %s148 = smul.addr %s147, 128
          %s149 = scalar_lea.hbm %s0, %s148
          %s151 = sshll.u32 %s143, 4
          %s152 = int_to_ptr.vmem [resolvable:$true] %s151
          %154 = dma.hbm_to_vmem [thread:$0]  %s149, 128, %s152, %s140
        $region24: #{tpu_custom_call.1} parent=19 // pred_fallthru
          _
      $region20: #{tpu_custom_call.1} parent=5 // pred_fallthru
        _
      %p155 = scmp.le.s32.totalorder 1, %s15
      %p156 = scmp.lt.s32.totalorder %s15, 3
      %p157 = pnand %p155, %p156
      %p158 = pneg %p157
      // Predicated region
      $region25: #{tpu_custom_call.1} parent=5 // pred_check
        _
      $region26: #{tpu_custom_call.1} parent=5 // pred_check_branch
        %160 = sbr.rel (%p157) target = $region28
      $region27: #{tpu_custom_call.1} parent=5 // pred_region
        %s161 = ssub.s32 %s15, 1
        %s162 = sand.u32 %s42, 1
        %s163 = scalar_lea.sflag [#allocation3], %s162
        %s164 = sand.u32 %s42, 1
        %s165 = smul.addr %s164, 8
        %s166 = scalar_lea.vmem [#allocation2], %s165
        // Predicated region
        $region29: #{tpu_custom_call.1} parent=27 // pred_check
          %p167 = pneg %p55
        $region30: #{tpu_custom_call.1} parent=27 // pred_check_branch
          %169 = sbr.rel (%p167) target = $region32
        $region31: #{tpu_custom_call.1} parent=27 // pred_region
          %170 = dma.done %s163, 128
        $region32: #{tpu_custom_call.1} parent=27 // pred_fallthru
          _
        // Predicated region
        $region33: #{tpu_custom_call.1} parent=27 // pred_check
          %p171 = pneg %p76
        $region34: #{tpu_custom_call.1} parent=27 // pred_check_branch
          %173 = sbr.rel (%p171) target = $region36
        $region35: #{tpu_custom_call.1} parent=27 // pred_region
          %174 = dma.done [#allocation6], 384
        $region36: #{tpu_custom_call.1} parent=27 // pred_fallthru
          _
        %s175 = sand.u32 %s42, 1
        %s176 = scalar_lea.sflag [#allocation3], %s175
        %s177 = sand.u32 %s42, 1
        %s178 = smul.addr %s177, 8
        %s179 = scalar_lea.vmem [#allocation2], %s178
        %p180 = pneg %p55
        %p181 = pneg %p52
        %p182 = pneg %p76
        %p183 = pneg %p73
        %p184 = pneg %p104
        %p185 = pneg %p101
        %s186 = sand.u32 %s91, 1
        %s187 = scalar_lea.sflag [#allocation4], %s186
        %s188 = sand.u32 %s91, 1
        %s189 = smul.addr %s188, 8
        %s190 = scalar_lea.vmem [#allocation7], %s189
        %v191 = vld [vmem:[%s166] sm:$0xff]
        %193 = vrot.lane.b32.xlu0 %v191, 4
        %v194 = vpop.permute.xlu0 %193
        %vm196 = vcmask 31744
        %v197 = vsel %vm196, 0.0, %v194
        %v198 = vld [vmem:[#allocation5] sm:$0xff]
        %s199 = scalar_lea.vmem [#allocation5], 8
        %v200 = vld [vmem:[%s199] sm:$0xff]
        %202 = vrot.lane.b32.xlu0 %v197, 126
        %v203 = vpop.permute.xlu0 %202
        %vm205 = vcmask 64512
        %v207 = vsel %vm205, %v200, 0
        %209 = vmatprep.subr.mxu0 0.0
        %210 = vmatpush1.msra.mxu0 0.0
        %211 = vmatprep.subr.mxu0 0.0
        %212 = vmatpush1.msra.mxu0 0.0
        %213 = vmatprep.subr.mxu0 0.0
        %214 = vmatpush1.msra.mxu0 0.0
        %215 = vmatprep.subr.mxu0 0.0
        %216 = vmatpush1.msra.mxu0 0.0
        %217 = vmatprep.subr.mxu0 0.0
        %218 = vmatpush1.msra.mxu0 0.0
        %219 = vmatprep.subr.mxu0 0.0
        %220 = vmatpush1.msra.mxu0 0.0
        %221 = vmatprep.subr.mxu0 0.0
        %222 = vmatpush1.msra.mxu0 0.0
        %223 = vmatprep.subr.mxu0 0.0
        %224 = vmatpush1.msra.mxu0 0.0
        %225 = vmatprep.subr.mxu0 0.0
        %226 = vmatpush1.msra.mxu0 0.0
        %227 = vmatprep.subr.mxu0 0.0
        %228 = vmatpush1.msra.mxu0 0.0
        %229 = vmatprep.subr.mxu0 0.0
        %230 = vmatpush1.msra.mxu0 0.0
        %231 = vmatprep.subr.mxu0 0.0
        %232 = vmatpush1.msra.mxu0 0.0
        %233 = vmatprep.subr.mxu0 0.0
        %234 = vmatpush1.msra.mxu0 0.0
        %235 = vmatprep.subr.mxu0 0.0
        %236 = vmatpush1.msra.mxu0 0.0
        %237 = vmatprep.subr.mxu0 0.0
        %238 = vmatpush1.msra.mxu0 0.0
        %239 = vmatprep.subr.mxu0 0.0
        %240 = vmatpush1.msra.mxu0 %v203
        %241 = vmatprep.subr.mxu0 0.0
        %242 = vmatpush2.msra.mxu0 0.0
        %243 = vmatprep.subr.mxu0 0.0
        %244 = vmatpush2.msra.mxu0 0.0
        %245 = vmatprep.subr.mxu0 0.0
        %246 = vmatpush2.msra.mxu0 0.0
        %247 = vmatprep.subr.mxu0 0.0
        %248 = vmatpush2.msra.mxu0 0.0
        %249 = vmatprep.subr.mxu0 0.0
        %250 = vmatpush2.msra.mxu0 0.0
        %251 = vmatprep.subr.mxu0 0.0
        %252 = vmatpush2.msra.mxu0 0.0
        %253 = vmatprep.subr.mxu0 0.0
        %254 = vmatpush2.msra.mxu0 0.0
        %255 = vmatprep.subr.mxu0 0.0
        %256 = vmatpush2.msra.mxu0 0.0
        %257 = vmatprep.subr.mxu0 0.0
        %258 = vmatpush2.msra.mxu0 0.0
        %259 = vmatprep.subr.mxu0 0.0
        %260 = vmatpush2.msra.mxu0 0.0
        %261 = vmatprep.subr.mxu0 0.0
        %262 = vmatpush2.msra.mxu0 0.0
        %263 = vmatprep.subr.mxu0 0.0
        %264 = vmatpush2.msra.mxu0 0.0
        %265 = vmatprep.subr.mxu0 0.0
        %266 = vmatpush2.msra.mxu0 0.0
        %267 = vmatprep.subr.mxu0 0.0
        %268 = vmatpush2.msra.mxu0 0.0
        %269 = vmatprep.subr.mxu0 0.0
        %270 = vmatpush2.msra.mxu0 0.0
        %271 = vmatprep.subr.mxu0 0.0
        %272 = vmatpush2.msra.mxu0 0.0
        %273 = vmatprep.mubr.f32.mxu0 0.0
        %274 = vmatmul.mubr.f32.gmra.mxu0 %v207
        %v275 = vpop.f32.mrf.mxu0
        %v276 = vadd.f32 0.0, %v275
        %v277 = vpop.f32.mrf.mxu0
        %278 = vdwg.mxu0
        %v280 = vsel %vm205, %v198, 0
        %282 = vmatprep.subr.mxu0 0.0
        %283 = vmatpush1.msra.mxu0 0.0
        %284 = vmatprep.subr.mxu0 0.0
        %285 = vmatpush1.msra.mxu0 0.0
        %286 = vmatprep.subr.mxu0 0.0
        %287 = vmatpush1.msra.mxu0 0.0
        %288 = vmatprep.subr.mxu0 0.0
        %289 = vmatpush1.msra.mxu0 0.0
        %290 = vmatprep.subr.mxu0 0.0
        %291 = vmatpush1.msra.mxu0 0.0
        %292 = vmatprep.subr.mxu0 0.0
        %293 = vmatpush1.msra.mxu0 0.0
        %294 = vmatprep.subr.mxu0 0.0
        %295 = vmatpush1.msra.mxu0 0.0
        %296 = vmatprep.subr.mxu0 0.0
        %297 = vmatpush1.msra.mxu0 0.0
        %298 = vmatprep.subr.mxu0 0.0
        %299 = vmatpush1.msra.mxu0 0.0
        %300 = vmatprep.subr.mxu0 0.0
        %301 = vmatpush1.msra.mxu0 0.0
        %302 = vmatprep.subr.mxu0 0.0
        %303 = vmatpush1.msra.mxu0 0.0
        %304 = vmatprep.subr.mxu0 0.0
        %305 = vmatpush1.msra.mxu0 0.0
        %306 = vmatprep.subr.mxu0 0.0
        %307 = vmatpush1.msra.mxu0 0.0
        %308 = vmatprep.subr.mxu0 0.0
        %309 = vmatpush1.msra.mxu0 0.0
        %310 = vmatprep.subr.mxu0 0.0
        %311 = vmatpush1.msra.mxu0 0.0
        %312 = vmatprep.subr.mxu0 0.0
        %313 = vmatpush1.msra.mxu0 %v197
        %314 = vmatprep.subr.mxu0 0.0
        %315 = vmatpush2.msra.mxu0 0.0
        %316 = vmatprep.subr.mxu0 0.0
        %317 = vmatpush2.msra.mxu0 0.0
        %318 = vmatprep.subr.mxu0 0.0
        %319 = vmatpush2.msra.mxu0 0.0
        %320 = vmatprep.subr.mxu0 0.0
        %321 = vmatpush2.msra.mxu0 0.0
        %322 = vmatprep.subr.mxu0 0.0
        %323 = vmatpush2.msra.mxu0 0.0
        %324 = vmatprep.subr.mxu0 0.0
        %325 = vmatpush2.msra.mxu0 0.0
        %326 = vmatprep.subr.mxu0 0.0
        %327 = vmatpush2.msra.mxu0 0.0
        %328 = vmatprep.subr.mxu0 0.0
        %329 = vmatpush2.msra.mxu0 0.0
        %330 = vmatprep.subr.mxu0 0.0
        %331 = vmatpush2.msra.mxu0 0.0
        %332 = vmatprep.subr.mxu0 0.0
        %333 = vmatpush2.msra.mxu0 0.0
        %334 = vmatprep.subr.mxu0 0.0
        %335 = vmatpush2.msra.mxu0 0.0
        %336 = vmatprep.subr.mxu0 0.0
        %337 = vmatpush2.msra.mxu0 0.0
        %338 = vmatprep.subr.mxu0 0.0
        %339 = vmatpush2.msra.mxu0 0.0
        %340 = vmatprep.subr.mxu0 0.0
        %341 = vmatpush2.msra.mxu0 0.0
        %342 = vmatprep.subr.mxu0 0.0
        %343 = vmatpush2.msra.mxu0 0.0
        %344 = vmatprep.subr.mxu0 0.0
        %345 = vmatpush2.msra.mxu0 0.0
        %346 = vmatprep.mubr.f32.mxu0 0.0
        %347 = vmatmul.mubr.f32.gmra.mxu0 %v280
        %v348 = vpop.f32.mrf.mxu0
        %v349 = vadd.f32 %v276, %v348
        %v350 = vpop.f32.mrf.mxu0
        %351 = vdwg.mxu0
        %s352 = scalar_lea.vmem [#allocation5], 16
        %v353 = vld [vmem:[%s352] sm:$0xff]
        %v355 = vsel %vm205, %v353, 0
        %357 = vmatprep.subr.mxu0 0.0
        %358 = vmatpush1.msra.mxu0 0.0
        %359 = vmatprep.subr.mxu0 0.0
        %360 = vmatpush1.msra.mxu0 0.0
        %361 = vmatprep.subr.mxu0 0.0
        %362 = vmatpush1.msra.mxu0 0.0
        %363 = vmatprep.subr.mxu0 0.0
        %364 = vmatpush1.msra.mxu0 0.0
        %365 = vmatprep.subr.mxu0 0.0
        %366 = vmatpush1.msra.mxu0 0.0
        %367 = vmatprep.subr.mxu0 0.0
        %368 = vmatpush1.msra.mxu0 0.0
        %369 = vmatprep.subr.mxu0 0.0
        %370 = vmatpush1.msra.mxu0 0.0
        %371 = vmatprep.subr.mxu0 0.0
        %372 = vmatpush1.msra.mxu0 0.0
        %373 = vmatprep.subr.mxu0 0.0
        %374 = vmatpush1.msra.mxu0 0.0
        %375 = vmatprep.subr.mxu0 0.0
        %376 = vmatpush1.msra.mxu0 0.0
        %377 = vmatprep.subr.mxu0 0.0
        %378 = vmatpush1.msra.mxu0 0.0
        %379 = vmatprep.subr.mxu0 0.0
        %380 = vmatpush1.msra.mxu0 0.0
        %381 = vmatprep.subr.mxu0 0.0
        %382 = vmatpush1.msra.mxu0 0.0
        %383 = vmatprep.subr.mxu0 0.0
        %384 = vmatpush1.msra.mxu0 0.0
        %385 = vmatprep.subr.mxu0 0.0
        %386 = vmatpush1.msra.mxu0 0.0
        %387 = vmatprep.subr.mxu0 0.0
        %388 = vmatpush1.msra.mxu0 %v191
        %389 = vmatprep.subr.mxu0 0.0
        %390 = vmatpush2.msra.mxu0 0.0
        %391 = vmatprep.subr.mxu0 0.0
        %392 = vmatpush2.msra.mxu0 0.0
        %393 = vmatprep.subr.mxu0 0.0
        %394 = vmatpush2.msra.mxu0 0.0
        %395 = vmatprep.subr.mxu0 0.0
        %396 = vmatpush2.msra.mxu0 0.0
        %397 = vmatprep.subr.mxu0 0.0
        %398 = vmatpush2.msra.mxu0 0.0
        %399 = vmatprep.subr.mxu0 0.0
        %400 = vmatpush2.msra.mxu0 0.0
        %401 = vmatprep.subr.mxu0 0.0
        %402 = vmatpush2.msra.mxu0 0.0
        %403 = vmatprep.subr.mxu0 0.0
        %404 = vmatpush2.msra.mxu0 0.0
        %405 = vmatprep.subr.mxu0 0.0
        %406 = vmatpush2.msra.mxu0 0.0
        %407 = vmatprep.subr.mxu0 0.0
        %408 = vmatpush2.msra.mxu0 0.0
        %409 = vmatprep.subr.mxu0 0.0
        %410 = vmatpush2.msra.mxu0 0.0
        %411 = vmatprep.subr.mxu0 0.0
        %412 = vmatpush2.msra.mxu0 0.0
        %413 = vmatprep.subr.mxu0 0.0
        %414 = vmatpush2.msra.mxu0 0.0
        %415 = vmatprep.subr.mxu0 0.0
        %416 = vmatpush2.msra.mxu0 0.0
        %417 = vmatprep.subr.mxu0 0.0
        %418 = vmatpush2.msra.mxu0 0.0
        %419 = vmatprep.subr.mxu0 0.0
        %420 = vmatpush2.msra.mxu0 0.0
        %421 = vmatprep.mubr.f32.mxu0 0.0
        %422 = vmatmul.mubr.f32.gmra.mxu0 %v355
        %v423 = vpop.f32.mrf.mxu0
        %v424 = vadd.f32 0.0, %v423
        %v425 = vpop.f32.mrf.mxu0
        %426 = vdwg.mxu0
        %v427 = vadd.f32 %v349, %v424
        %vm428 = vcmask 130048
        %429 = vst.msk [vmem:[%s190] sm:$0xff] %vm428, %v427
        %s430 = sand.u32 %s91, 1
        %s431 = scalar_lea.sflag [#allocation4], %s430
        %s432 = sand.u32 %s91, 1
        %s433 = smul.addr %s432, 8
        %s434 = scalar_lea.vmem [#allocation7], %s433
        // Predicated region
        $region37: #{tpu_custom_call.1} parent=27 // pred_check
          %p435 = pneg %p101
        $region38: #{tpu_custom_call.1} parent=27 // pred_check_branch
          %437 = sbr.rel (%p435) target = $region40
        $region39: #{tpu_custom_call.1} parent=27 // pred_region
          %s439 = ssub.s32 128, 128
          %440 = vsyncadd %s431, %s439
          %s441 = sadd.s32 %s25, %s24
          %s442 = smul.addr %s441, 128
          %s443 = scalar_lea.hbm %s2, %s442
          %s445 = sshll.u32 %s434, 4
          %s446 = int_to_ptr.vmem [resolvable:$true] %s445
          %448 = dma.vmem_to_hbm [thread:$0]  %s446, 128, %s443, %s431
        $region40: #{tpu_custom_call.1} parent=27 // pred_fallthru
          _
      $region28: #{tpu_custom_call.1} parent=5 // pred_fallthru
        _
      %p449 = scmp.le.s32.totalorder 2, %s15
      // Predicated region
      $region41: #{tpu_custom_call.1} parent=5 // pred_check
        %p450 = pneg %p449
      $region42: #{tpu_custom_call.1} parent=5 // pred_check_branch
        %452 = sbr.rel (%p450) target = $region44
      $region43: #{tpu_custom_call.1} parent=5 // pred_region
        %s453 = ssub.s32 %s15, 2
        // Predicated region
        $region45: #{tpu_custom_call.1} parent=43 // pred_check
          %p454 = pneg %p107
        $region46: #{tpu_custom_call.1} parent=43 // pred_check_branch
          %456 = sbr.rel (%p454) target = $region48
        $region47: #{tpu_custom_call.1} parent=43 // pred_region
          %s457 = sand.u32 %s92, 1
          %s458 = scalar_lea.sflag [#allocation4], %s457
          %s459 = sand.u32 %s92, 1
          %s460 = smul.addr %s459, 8
          %s461 = scalar_lea.vmem [#allocation7], %s460
          %462 = dma.done %s458, 128
        $region48: #{tpu_custom_call.1} parent=43 // pred_fallthru
          _
      $region44: #{tpu_custom_call.1} parent=5 // pred_fallthru
        _
    $region6: #{tpu_custom_call.1} parent=1 // loop_footer
      %s19 = sadd.s32 1, %s15
    $region7: #{tpu_custom_call.1} parent=1 // loop_footer_branch
      %14 = sbr.rel target = $region3
    $region8: #{tpu_custom_call.1} parent=1 // loop_exit
      _
    %463 = vsyncpa [#allocation3], 1
    %s464 = scalar_lea.sflag [#allocation3], 1
    %465 = vsyncpa %s464, 1
    %466 = vsyncpa [#allocation6], 1
    %467 = vsyncpa [#allocation4], 1
    %s468 = scalar_lea.sflag [#allocation4], 1
    %469 = vsyncpa %s468, 1

</llo_original>
